<compile_context>
chip_gen: v5e
topology: v5e:2x2
jax: 0.10.0
libtpu: 0.0.40
codegen_flags: <defaults>
</compile_context>

<pallas_src>
from collections import defaultdict

import numpy as np
import jax
import jax.numpy as jnp
from jax.experimental import pallas as pl
from jax.experimental.pallas import tpu as pltpu

_NEG_BIG = -1e30          # logits padding value (finite, so 0 * pad == 0)
_EPS = 0.1                # label smoothing (matches F.cross_entropy(label_smoothing=0.1))
_OUT_W = 128              # lane-dense output row width


# ----------------------------- fused kernel -------------------------------- #
def _make_fused_kernel(num_heads: int, n_pad: int):
    """Fused kernel.

    Inputs:
      logits_ref: (num_heads * n_pad, C_pad) f32.  Head 0 = group logits,
                  heads 1..G = per-group family logits.  Padded with -1e30.
      meta_ref:   (num_heads * n_pad, 2) i32.  col 0 = target class
                  (-1 => ignored row), col 1 = true class count for that row.
      emb_ref:    (N, D) embeddings (any float dtype, upcast in-kernel).
    Output:
      out_ref:    (1, 128) f32.  lane 2h = masked CE sum of head h,
                  lane 2h+1 = valid count of head h, lane 2*num_heads = L2 mean.
    """

    def kernel(logits_ref, meta_ref, emb_ref, out_ref):
        x = logits_ref[...].astype(jnp.float32)              # (RN, Cp)
        rn, c_pad = x.shape

        # --- unpack merged int metadata without lane-offset slicing ---------
        meta = meta_ref[...]                                  # (RN, 2) i32
        col = jax.lax.broadcasted_iota(jnp.int32, meta.shape, 1)
        tgt = jnp.sum(jnp.where(col == 0, meta, 0), axis=-1, keepdims=True)   # (RN,1)
        ccnt = jnp.sum(jnp.where(col == 1, meta, 0), axis=-1, keepdims=True)  # (RN,1)
        ccnt_f = ccnt.astype(jnp.float32)

        valid = (tgt >= 0).astype(jnp.float32)                # (RN, 1)

        cls = jax.lax.broadcasted_iota(jnp.int32, (rn, c_pad), 1)
        onehot = (cls == tgt).astype(jnp.float32)             # (RN, Cp)
        cmask = (cls < ccnt).astype(jnp.float32)               # true-class mask

        # --- label-smoothed CE without materializing logp -------------------
        m = jnp.max(x, axis=-1, keepdims=True)
        lse = m + jnp.log(jnp.sum(jnp.exp(x - m), axis=-1, keepdims=True))
        x_tgt = jnp.sum(onehot * x, axis=-1, keepdims=True)    # x[target]
        x_sum = jnp.sum(cmask * x, axis=-1, keepdims=True)     # sum over true classes

        per = lse - (1.0 - _EPS) * x_tgt - _EPS * (x_sum / ccnt_f)   # (RN, 1)
        masked = per * valid

        # --- embedding L2 regularizer (mean of per-row 2-norms) -------------
        e = emb_ref[...].astype(jnp.float32)                  # (N, D)
        sq = jnp.sum(e * e, axis=-1, keepdims=True)
        # TODO(synk): add an epsilon under the sqrt (or custom_vjp) if this is
        # ever differentiated -- grad of sqrt at an all-zero row is inf.
        l2_mean = jnp.sum(jnp.sqrt(sq), keepdims=True) * (1.0 / e.shape[0])   # (1,1)

        # --- assemble one lane-dense output row ------------------------------
        lane = jax.lax.broadcasted_iota(jnp.int32, (1, _OUT_W), 1)
        out = jnp.zeros((1, _OUT_W), jnp.float32)
        for h in range(num_heads):
            lo = h * n_pad
            hi = lo + n_pad
            s = jnp.sum(masked[lo:hi, :], keepdims=True)       # (1,1)
            c = jnp.sum(valid[lo:hi, :], keepdims=True)        # (1,1)
            out = jnp.where(lane == 2 * h, s, out)
            out = jnp.where(lane == 2 * h + 1, c, out)
        out = jnp.where(lane == 2 * num_heads, l2_mean, out)
        out_ref[...] = out

    return kernel


# ------------------------------ module port -------------------------------- #
class HierarchicalLossPallas:
    """JAX/Pallas port of HierarchicalLoss.forward (single fused kernel)."""

    def __init__(self, family_to_group, alpha=0.3):
        self.family_to_group = dict(family_to_group)
        self.alpha = float(alpha)

        self.group_to_families = defaultdict(list)
        for fam, grp in family_to_group.items():
            self.group_to_families[grp].append(fam)
        self.group_ids = list(self.group_to_families.keys())      # insertion order
        self.family_to_idx = {
            gid: {f: i for i, f in enumerate(sorted(fams))}
            for gid, fams in self.group_to_families.items()
        }

        num_heads = 1 + len(self.group_ids)
        assert 2 * num_heads + 1 <= _OUT_W, "too many groups for one output row"

        # Precompute per-family target column: row 0 = group id,
        # row (1+k) = within-group family index for group k, -1 elsewhere.
        self._default_code = np.full((num_heads,), -1, np.int32)
        self._fam_code = {}
        for fam, gid in self.family_to_group.items():
            col = np.full((num_heads,), -1, np.int32)
            col[0] = gid
            k = self.group_ids.index(gid)
            col[1 + k] = self.family_to_idx[gid][fam]
            self._fam_code[fam] = col

        self._group_weights = [
            len(self.group_to_families[g]) / len(self.family_to_group)
            for g in self.group_ids
        ]

        self._forward = jax.jit(self._forward_impl)

    # ------------------------ traced / jitted part ------------------------- #
    def _forward_impl(self, meta, embeddings, group_logits, fam_logits):
        num_heads = 1 + len(self.group_ids)
        n_pad = meta.shape[0] // num_heads
        heads = (group_logits,) + tuple(fam_logits)

        c_max = max(h.shape[1] for h in heads)
        c_pad = max(128, ((c_max + 127) // 128) * 128)

        # Pack all heads into one lane-dense slab, padded with a big negative
        # logit so padding never contributes to logsumexp.
        blocks = []
        for h in heads:
            blk = jnp.full((n_pad, c_pad), _NEG_BIG, jnp.float32)
            blk = blk.at[: h.shape[0], : h.shape[1]].set(h.astype(jnp.float32))
            blocks.append(blk)
        packed = jnp.concatenate(blocks, axis=0)                  # (H*Np, Cp)
        rn = num_heads * n_pad

        out = pl.pallas_call(
            _make_fused_kernel(num_heads, n_pad),
            grid=(1,),
            out_shape=jax.ShapeDtypeStruct((1, _OUT_W), jnp.float32),
            in_specs=[
                pl.BlockSpec((rn, c_pad), lambda i: (0, 0)),
                pl.BlockSpec((rn, 2), lambda i: (0, 0)),
                pl.BlockSpec(embeddings.shape, lambda i: (0, 0)),
            ],
            out_specs=pl.BlockSpec((1, _OUT_W), lambda i: (0, 0)),
            compiler_params=pltpu.CompilerParams(
                dimension_semantics=("arbitrary",)),
        )(packed, meta, embeddings)
        # TODO(synk): if batch N grows large, tile over N with
        # grid=(pl.cdiv(N, TN),) and accumulate the partial sums in VMEM
        # scratch (pl.when init at step 0 / finalize at the last step).

        # ---- group loss: CE, label_smoothing=0.1, ignore_index=-1 ----
        gsum, gcnt = out[0, 0], out[0, 1]
        group_loss = jnp.where(gcnt > 0, gsum / jnp.maximum(gcnt, 1.0), 0.0)

        # ---- per-group family losses ----
        family_loss = jnp.float32(0.0)
        nvalid = jnp.float32(0.0)
        for k, w in enumerate(self._group_weights):
            fsum = out[0, 2 * (k + 1)]
            fcnt = out[0, 2 * (k + 1) + 1]
            has = (fcnt > 0).astype(jnp.float32)
            family_loss = family_loss + has * (float(w) * fsum / jnp.maximum(fcnt, 1.0))
            nvalid = nvalid + has
        family_loss = family_loss / jnp.maximum(nvalid, 1.0)

        # ---- embedding L2 regularizer ----
        l2_reg = 0.001 * out[0, 2 * num_heads]

        return (self.alpha * group_loss
                + (1.0 - self.alpha) * family_loss
                + l2_reg)

    # ----------------------------- host part ------------------------------- #
    def __call__(self, embeddings, group_logits, family_logits, true_families):
        if not isinstance(true_families, list):
            true_families = [true_families]
        n = len(true_families)
        n_pad = max(8, ((n + 7) // 8) * 8)
        num_heads = 1 + len(self.group_ids)

        # targets: one n_pad-row block per head; -1 == ignored (incl. padding)
        tgt = np.full((num_heads, n_pad), -1, np.int32)
        for j, fam in enumerate(true_families):
            tgt[:, j] = self._fam_code.get(fam, self._default_code)

        fam_tuple = tuple(family_logits[str(g)] for g in self.group_ids)

        counts = np.empty((num_heads, n_pad), np.int32)
        counts[0, :] = group_logits.shape[1]
        for k, fl in enumerate(fam_tuple):
            counts[k + 1, :] = fl.shape[1]

        meta = np.stack([tgt.reshape(-1), counts.reshape(-1)], axis=1)  # (H*Np, 2)

        return self._forward(jnp.asarray(meta), embeddings, group_logits, fam_tuple)


# --------------------------- numpy reference -------------------------------- #
def _reference_loss(family_to_group, alpha, embeddings, group_logits,
                    family_logits, true_families):
    """float64 numpy mirror of the PyTorch module (for validation)."""
    group_to_families = defaultdict(list)
    for fam, grp in family_to_group.items():
        group_to_families[grp].append(fam)
    family_to_idx = {g: {f: i for i, f in enumerate(sorted(fs))}
                     for g, fs in group_to_families.items()}
    tg = np.array([family_to_group.get(f, -1) for f in true_families], np.int64)

    def ce_smooth(logits, targets, eps=0.1):
        logits = np.asarray(logits, np.float64)
        m = logits.max(axis=1, keepdims=True)
        lse = (m + np.log(np.exp(logits - m).sum(axis=1, keepdims=True)))[:, 0]
        xs = logits.sum(axis=1)
        xt = logits[np.arange(len(targets)), targets]
        k = logits.shape[1]
        return (lse - (1 - eps) * xt - eps * xs / k).mean()

    valid = tg != -1
    group_loss = ce_smooth(np.asarray(group_logits)[valid], tg[valid]) if valid.any() else 0.0

    family_loss, nv = 0.0, 0
    for gid, fams in group_to_families.items():
        mask = tg == gid
        if not mask.any():
            continue
        sub = np.asarray(family_logits[str(gid)])[mask]
        idx = np.array([family_to_idx[gid][f] for f in true_families
                        if family_to_group.get(f) == gid])
        family_loss += (len(fams) / len(family_to_group)) * ce_smooth(sub, idx)
        nv += 1
    if nv:
        family_loss /= nv

    emb = np.asarray(embeddings, np.float64)
    l2 = 0.001 * np.sqrt((emb ** 2).sum(axis=1)).mean()
    return alpha * group_loss + (1 - alpha) * family_loss + l2


# --------------------------------- demo ------------------------------------- #
if __name__ == "__main__":
    family_to_group = {
        "famA": 0, "famB": 0, "famC": 0,
        "famD": 1, "famE": 1,
        "famF": 2, "famG": 2, "famH": 2,
    }
    loss_mod = HierarchicalLossPallas(family_to_group, alpha=0.3)

    batch = 8
    emb_dim = 32
    num_groups = 3

    key = jax.random.PRNGKey(0)
    k_emb, k_grp, k0, k1, k2 = jax.random.split(key, 5)

    embeddings = jax.random.normal(k_emb, (batch, emb_dim), dtype=jnp.float32)
    group_logits = jax.random.normal(k_grp, (batch, num_groups), dtype=jnp.float32)
    family_logits = {
        "0": jax.random.normal(k0, (batch, 3), dtype=jnp.float32),
        "1": jax.random.normal(k1, (batch, 2), dtype=jnp.float32),
        "2": jax.random.normal(k2, (batch, 3), dtype=jnp.float32),
    }
    # one unknown family exercises the ignore_index=-1 path
    true_families = ["famA", "famD", "famF", "famB",
                     "famH", "famE", "famC", "famUnknown"]

    total_loss = loss_mod(embeddings, group_logits, family_logits, true_families)
    jax.block_until_ready(total_loss)

    ref = _reference_loss(family_to_group, 0.3,
                          np.asarray(embeddings), np.asarray(group_logits),
                          {k: np.asarray(v) for k, v in family_logits.items()},
                          true_families)
    assert np.isfinite(np.asarray(total_loss))
    np.testing.assert_allclose(np.asarray(total_loss), ref, rtol=1e-3, atol=1e-5)
    print("KERNEL_OK")
</pallas_src>

<mosaic_0001>
module attributes {stable_mosaic.version = 11 : i64} {
  func.func @kernel(%arg0: i32, %arg1: memref<32x128xf32, #tpu.memory_space<vmem>>, %arg2: memref<32x2xi32, #tpu.memory_space<vmem>>, %arg3: memref<8x32xf32, #tpu.memory_space<vmem>>, %arg4: memref<1x128xf32, #tpu.memory_space<vmem>>) attributes {dimension_semantics = [#tpu.dimension_semantics<arbitrary>], iteration_bounds = array<i64: 1>, scalar_prefetch = 0 : i64, scratch_operands = 0 : i64, tpu.core_type = #tpu.core_type<tc>, window_params = [{pipeline_mode = #tpu.pipeline_mode<synchronous>, transform_indices = @transform_0, window_bounds = array<i64: 32, 128>}, {pipeline_mode = #tpu.pipeline_mode<synchronous>, transform_indices = @transform_1, window_bounds = array<i64: 32, 2>}, {pipeline_mode = #tpu.pipeline_mode<synchronous>, transform_indices = @transform_2, window_bounds = array<i64: 8, 32>}, {pipeline_mode = #tpu.pipeline_mode<synchronous>, transform_indices = @transform_3, window_bounds = array<i64: 1, 128>}]} {
    %c0 = arith.constant 0 : index
    %c0_0 = arith.constant 0 : index
    %0 = vector.load %arg1[%c0, %c0_0] : memref<32x128xf32, #tpu.memory_space<vmem>>, vector<32x128xf32>
    %c0_1 = arith.constant 0 : index
    %c0_2 = arith.constant 0 : index
    %1 = vector.load %arg2[%c0_1, %c0_2] : memref<32x2xi32, #tpu.memory_space<vmem>>, vector<32x2xi32>
    %2 = tpu.iota {dimensions = array<i32: 1>} : vector<32x2xi32>
    %c0_i32 = arith.constant 0 : i32
    %3 = vector.broadcast %c0_i32 : i32 to vector<32x2xi32>
    %4 = arith.cmpi eq, %2, %3 : vector<32x2xi32>
    %c0_i32_3 = arith.constant 0 : i32
    %5 = vector.broadcast %c0_i32_3 : i32 to vector<32x2xi32>
    %6 = arith.select %4, %1, %5 : vector<32x2xi1>, vector<32x2xi32>
    %cst = arith.constant dense<0> : vector<32xi32>
    %7 = vector.multi_reduction <add>, %6, %cst [1] : vector<32x2xi32> to vector<32xi32>
    %8 = vector.shape_cast %7 : vector<32xi32> to vector<32x1xi32>
    %c1_i32 = arith.constant 1 : i32
    %9 = vector.broadcast %c1_i32 : i32 to vector<32x2xi32>
    %10 = arith.cmpi eq, %2, %9 : vector<32x2xi32>
    %c0_i32_4 = arith.constant 0 : i32
    %11 = vector.broadcast %c0_i32_4 : i32 to vector<32x2xi32>
    %12 = arith.select %10, %1, %11 : vector<32x2xi1>, vector<32x2xi32>
    %cst_5 = arith.constant dense<0> : vector<32xi32>
    %13 = vector.multi_reduction <add>, %12, %cst_5 [1] : vector<32x2xi32> to vector<32xi32>
    %14 = vector.shape_cast %13 : vector<32xi32> to vector<32x1xi32>
    %15 = arith.sitofp %14 : vector<32x1xi32> to vector<32x1xf32>
    %c0_i32_6 = arith.constant 0 : i32
    %16 = vector.broadcast %c0_i32_6 : i32 to vector<32x1xi32>
    %17 = arith.cmpi sge, %8, %16 : vector<32x1xi32>
    %18 = arith.extui %17 : vector<32x1xi1> to vector<32x1xi32>
    %19 = arith.sitofp %18 : vector<32x1xi32> to vector<32x1xf32>
    %20 = tpu.iota {dimensions = array<i32: 1>} : vector<32x128xi32>
    %21 = vector.broadcast %8 : vector<32x1xi32> to vector<32x128xi32>
    %22 = arith.cmpi eq, %20, %21 : vector<32x128xi32>
    %23 = arith.extui %22 : vector<32x128xi1> to vector<32x128xi32>
    %24 = arith.sitofp %23 : vector<32x128xi32> to vector<32x128xf32>
    %25 = vector.broadcast %14 : vector<32x1xi32> to vector<32x128xi32>
    %26 = arith.cmpi slt, %20, %25 : vector<32x128xi32>
    %27 = arith.extui %26 : vector<32x128xi1> to vector<32x128xi32>
    %28 = arith.sitofp %27 : vector<32x128xi32> to vector<32x128xf32>
    %cst_7 = arith.constant dense<0xFF800000> : vector<32xf32>
    %29 = vector.multi_reduction <maximumf>, %0, %cst_7 [1] : vector<32x128xf32> to vector<32xf32>
    %30 = vector.shape_cast %29 : vector<32xf32> to vector<32x1xf32>
    %31 = vector.broadcast %30 : vector<32x1xf32> to vector<32x128xf32>
    %32 = arith.subf %0, %31 : vector<32x128xf32>
    %33 = math.exp %32 : vector<32x128xf32>
    %cst_8 = arith.constant dense<0.000000e+00> : vector<32xf32>
    %34 = vector.multi_reduction <add>, %33, %cst_8 [1] : vector<32x128xf32> to vector<32xf32>
    %35 = vector.shape_cast %34 : vector<32xf32> to vector<32x1xf32>
    %36 = math.log %35 : vector<32x1xf32>
    %37 = arith.addf %30, %36 : vector<32x1xf32>
    %38 = arith.mulf %24, %0 : vector<32x128xf32>
    %cst_9 = arith.constant dense<0.000000e+00> : vector<32xf32>
    %39 = vector.multi_reduction <add>, %38, %cst_9 [1] : vector<32x128xf32> to vector<32xf32>
    %40 = vector.shape_cast %39 : vector<32xf32> to vector<32x1xf32>
    %41 = arith.mulf %28, %0 : vector<32x128xf32>
    %cst_10 = arith.constant dense<0.000000e+00> : vector<32xf32>
    %42 = vector.multi_reduction <add>, %41, %cst_10 [1] : vector<32x128xf32> to vector<32xf32>
    %43 = vector.shape_cast %42 : vector<32xf32> to vector<32x1xf32>
    %cst_11 = arith.constant 0.899999976 : f32
    %44 = vector.broadcast %cst_11 : f32 to vector<32x1xf32>
    %45 = arith.mulf %44, %40 : vector<32x1xf32>
    %46 = arith.subf %37, %45 : vector<32x1xf32>
    %47 = arith.divf %43, %15 : vector<32x1xf32>
    %cst_12 = arith.constant 1.000000e-01 : f32
    %48 = vector.broadcast %cst_12 : f32 to vector<32x1xf32>
    %49 = arith.mulf %48, %47 : vector<32x1xf32>
    %50 = arith.subf %46, %49 : vector<32x1xf32>
    %51 = arith.mulf %50, %19 : vector<32x1xf32>
    %c0_13 = arith.constant 0 : index
    %c0_14 = arith.constant 0 : index
    %52 = vector.load %arg3[%c0_13, %c0_14] : memref<8x32xf32, #tpu.memory_space<vmem>>, vector<8x32xf32>
    %53 = arith.mulf %52, %52 : vector<8x32xf32>
    %cst_15 = arith.constant dense<0.000000e+00> : vector<8xf32>
    %54 = vector.multi_reduction <add>, %53, %cst_15 [1] : vector<8x32xf32> to vector<8xf32>
    %55 = vector.shape_cast %54 : vector<8xf32> to vector<8x1xf32>
    %56 = math.sqrt %55 : vector<8x1xf32>
    %57 = vector.shape_cast %56 : vector<8x1xf32> to vector<1x8x1xf32>
    %cst_16 = arith.constant dense<0.000000e+00> : vector<1xf32>
    %58 = vector.multi_reduction <add>, %57, %cst_16 [1, 2] : vector<1x8x1xf32> to vector<1xf32>
    %59 = vector.shape_cast %58 : vector<1xf32> to vector<1x1x1xf32>
    %60 = vector.extract %59[0, 0, 0] : f32 from vector<1x1x1xf32>
    %61 = vector.broadcast %60 : f32 to vector<1x1xf32>
    %cst_17 = arith.constant 1.250000e-01 : f32
    %62 = vector.broadcast %cst_17 : f32 to vector<1x1xf32>
    %63 = arith.mulf %61, %62 : vector<1x1xf32>
    %64 = tpu.iota {dimensions = array<i32: 1>} : vector<1x128xi32>
    %cst_18 = arith.constant 0.000000e+00 : f32
    %65 = vector.broadcast %cst_18 : f32 to vector<1x128xf32>
    %66 = vector.extract_strided_slice %51 {offsets = [0, 0], sizes = [8, 1], strides = [1, 1]} : vector<32x1xf32> to vector<8x1xf32>
    %67 = vector.shape_cast %66 : vector<8x1xf32> to vector<1x8x1xf32>
    %cst_19 = arith.constant dense<0.000000e+00> : vector<1xf32>
    %68 = vector.multi_reduction <add>, %67, %cst_19 [1, 2] : vector<1x8x1xf32> to vector<1xf32>
    %69 = vector.shape_cast %68 : vector<1xf32> to vector<1x1x1xf32>
    %70 = vector.extract %69[0, 0, 0] : f32 from vector<1x1x1xf32>
    %71 = vector.broadcast %70 : f32 to vector<1x1xf32>
    %72 = vector.extract_strided_slice %19 {offsets = [0, 0], sizes = [8, 1], strides = [1, 1]} : vector<32x1xf32> to vector<8x1xf32>
    %73 = vector.shape_cast %72 : vector<8x1xf32> to vector<1x8x1xf32>
    %cst_20 = arith.constant dense<0.000000e+00> : vector<1xf32>
    %74 = vector.multi_reduction <add>, %73, %cst_20 [1, 2] : vector<1x8x1xf32> to vector<1xf32>
    %75 = vector.shape_cast %74 : vector<1xf32> to vector<1x1x1xf32>
    %76 = vector.extract %75[0, 0, 0] : f32 from vector<1x1x1xf32>
    %77 = vector.broadcast %76 : f32 to vector<1x1xf32>
    %c0_i32_21 = arith.constant 0 : i32
    %78 = vector.broadcast %c0_i32_21 : i32 to vector<1x128xi32>
    %79 = arith.cmpi eq, %64, %78 : vector<1x128xi32>
    %80 = vector.shape_cast %71 : vector<1x1xf32> to vector<1x1xf32>
    %81 = vector.broadcast %80 : vector<1x1xf32> to vector<1x128xf32>
    %82 = arith.select %79, %81, %65 : vector<1x128xi1>, vector<1x128xf32>
    %c1_i32_22 = arith.constant 1 : i32
    %83 = vector.broadcast %c1_i32_22 : i32 to vector<1x128xi32>
    %84 = arith.cmpi eq, %64, %83 : vector<1x128xi32>
    %85 = vector.shape_cast %77 : vector<1x1xf32> to vector<1x1xf32>
    %86 = vector.broadcast %85 : vector<1x1xf32> to vector<1x128xf32>
    %87 = arith.select %84, %86, %82 : vector<1x128xi1>, vector<1x128xf32>
    %88 = vector.extract_strided_slice %51 {offsets = [8, 0], sizes = [8, 1], strides = [1, 1]} : vector<32x1xf32> to vector<8x1xf32>
    %89 = vector.shape_cast %88 : vector<8x1xf32> to vector<1x8x1xf32>
    %cst_23 = arith.constant dense<0.000000e+00> : vector<1xf32>
    %90 = vector.multi_reduction <add>, %89, %cst_23 [1, 2] : vector<1x8x1xf32> to vector<1xf32>
    %91 = vector.shape_cast %90 : vector<1xf32> to vector<1x1x1xf32>
    %92 = vector.extract %91[0, 0, 0] : f32 from vector<1x1x1xf32>
    %93 = vector.broadcast %92 : f32 to vector<1x1xf32>
    %94 = vector.extract_strided_slice %19 {offsets = [8, 0], sizes = [8, 1], strides = [1, 1]} : vector<32x1xf32> to vector<8x1xf32>
    %95 = vector.shape_cast %94 : vector<8x1xf32> to vector<1x8x1xf32>
    %cst_24 = arith.constant dense<0.000000e+00> : vector<1xf32>
    %96 = vector.multi_reduction <add>, %95, %cst_24 [1, 2] : vector<1x8x1xf32> to vector<1xf32>
    %97 = vector.shape_cast %96 : vector<1xf32> to vector<1x1x1xf32>
    %98 = vector.extract %97[0, 0, 0] : f32 from vector<1x1x1xf32>
    %99 = vector.broadcast %98 : f32 to vector<1x1xf32>
    %c2_i32 = arith.constant 2 : i32
    %100 = vector.broadcast %c2_i32 : i32 to vector<1x128xi32>
    %101 = arith.cmpi eq, %64, %100 : vector<1x128xi32>
    %102 = vector.shape_cast %93 : vector<1x1xf32> to vector<1x1xf32>
    %103 = vector.broadcast %102 : vector<1x1xf32> to vector<1x128xf32>
    %104 = arith.select %101, %103, %87 : vector<1x128xi1>, vector<1x128xf32>
    %c3_i32 = arith.constant 3 : i32
    %105 = vector.broadcast %c3_i32 : i32 to vector<1x128xi32>
    %106 = arith.cmpi eq, %64, %105 : vector<1x128xi32>
    %107 = vector.shape_cast %99 : vector<1x1xf32> to vector<1x1xf32>
    %108 = vector.broadcast %107 : vector<1x1xf32> to vector<1x128xf32>
    %109 = arith.select %106, %108, %104 : vector<1x128xi1>, vector<1x128xf32>
    %110 = vector.extract_strided_slice %51 {offsets = [16, 0], sizes = [8, 1], strides = [1, 1]} : vector<32x1xf32> to vector<8x1xf32>
    %111 = vector.shape_cast %110 : vector<8x1xf32> to vector<1x8x1xf32>
    %cst_25 = arith.constant dense<0.000000e+00> : vector<1xf32>
    %112 = vector.multi_reduction <add>, %111, %cst_25 [1, 2] : vector<1x8x1xf32> to vector<1xf32>
    %113 = vector.shape_cast %112 : vector<1xf32> to vector<1x1x1xf32>
    %114 = vector.extract %113[0, 0, 0] : f32 from vector<1x1x1xf32>
    %115 = vector.broadcast %114 : f32 to vector<1x1xf32>
    %116 = vector.extract_strided_slice %19 {offsets = [16, 0], sizes = [8, 1], strides = [1, 1]} : vector<32x1xf32> to vector<8x1xf32>
    %117 = vector.shape_cast %116 : vector<8x1xf32> to vector<1x8x1xf32>
    %cst_26 = arith.constant dense<0.000000e+00> : vector<1xf32>
    %118 = vector.multi_reduction <add>, %117, %cst_26 [1, 2] : vector<1x8x1xf32> to vector<1xf32>
    %119 = vector.shape_cast %118 : vector<1xf32> to vector<1x1x1xf32>
    %120 = vector.extract %119[0, 0, 0] : f32 from vector<1x1x1xf32>
    %121 = vector.broadcast %120 : f32 to vector<1x1xf32>
    %c4_i32 = arith.constant 4 : i32
    %122 = vector.broadcast %c4_i32 : i32 to vector<1x128xi32>
    %123 = arith.cmpi eq, %64, %122 : vector<1x128xi32>
    %124 = vector.shape_cast %115 : vector<1x1xf32> to vector<1x1xf32>
    %125 = vector.broadcast %124 : vector<1x1xf32> to vector<1x128xf32>
    %126 = arith.select %123, %125, %109 : vector<1x128xi1>, vector<1x128xf32>
    %c5_i32 = arith.constant 5 : i32
    %127 = vector.broadcast %c5_i32 : i32 to vector<1x128xi32>
    %128 = arith.cmpi eq, %64, %127 : vector<1x128xi32>
    %129 = vector.shape_cast %121 : vector<1x1xf32> to vector<1x1xf32>
    %130 = vector.broadcast %129 : vector<1x1xf32> to vector<1x128xf32>
    %131 = arith.select %128, %130, %126 : vector<1x128xi1>, vector<1x128xf32>
    %132 = vector.extract_strided_slice %51 {offsets = [24, 0], sizes = [8, 1], strides = [1, 1]} : vector<32x1xf32> to vector<8x1xf32>
    %133 = vector.shape_cast %132 : vector<8x1xf32> to vector<1x8x1xf32>
    %cst_27 = arith.constant dense<0.000000e+00> : vector<1xf32>
    %134 = vector.multi_reduction <add>, %133, %cst_27 [1, 2] : vector<1x8x1xf32> to vector<1xf32>
    %135 = vector.shape_cast %134 : vector<1xf32> to vector<1x1x1xf32>
    %136 = vector.extract %135[0, 0, 0] : f32 from vector<1x1x1xf32>
    %137 = vector.broadcast %136 : f32 to vector<1x1xf32>
    %138 = vector.extract_strided_slice %19 {offsets = [24, 0], sizes = [8, 1], strides = [1, 1]} : vector<32x1xf32> to vector<8x1xf32>
    %139 = vector.shape_cast %138 : vector<8x1xf32> to vector<1x8x1xf32>
    %cst_28 = arith.constant dense<0.000000e+00> : vector<1xf32>
    %140 = vector.multi_reduction <add>, %139, %cst_28 [1, 2] : vector<1x8x1xf32> to vector<1xf32>
    %141 = vector.shape_cast %140 : vector<1xf32> to vector<1x1x1xf32>
    %142 = vector.extract %141[0, 0, 0] : f32 from vector<1x1x1xf32>
    %143 = vector.broadcast %142 : f32 to vector<1x1xf32>
    %c6_i32 = arith.constant 6 : i32
    %144 = vector.broadcast %c6_i32 : i32 to vector<1x128xi32>
    %145 = arith.cmpi eq, %64, %144 : vector<1x128xi32>
    %146 = vector.shape_cast %137 : vector<1x1xf32> to vector<1x1xf32>
    %147 = vector.broadcast %146 : vector<1x1xf32> to vector<1x128xf32>
    %148 = arith.select %145, %147, %131 : vector<1x128xi1>, vector<1x128xf32>
    %c7_i32 = arith.constant 7 : i32
    %149 = vector.broadcast %c7_i32 : i32 to vector<1x128xi32>
    %150 = arith.cmpi eq, %64, %149 : vector<1x128xi32>
    %151 = vector.shape_cast %143 : vector<1x1xf32> to vector<1x1xf32>
    %152 = vector.broadcast %151 : vector<1x1xf32> to vector<1x128xf32>
    %153 = arith.select %150, %152, %148 : vector<1x128xi1>, vector<1x128xf32>
    %c8_i32 = arith.constant 8 : i32
    %154 = vector.broadcast %c8_i32 : i32 to vector<1x128xi32>
    %155 = arith.cmpi eq, %64, %154 : vector<1x128xi32>
    %156 = vector.shape_cast %63 : vector<1x1xf32> to vector<1x1xf32>
    %157 = vector.broadcast %156 : vector<1x1xf32> to vector<1x128xf32>
    %158 = arith.select %155, %157, %153 : vector<1x128xi1>, vector<1x128xf32>
    %c0_29 = arith.constant 0 : index
    %c0_30 = arith.constant 0 : index
    %159 = vector.load %arg4[%c0_29, %c0_30] : memref<1x128xf32, #tpu.memory_space<vmem>>, vector<1x128xf32>
    tpu.vector_store %arg4[%c0_29, %c0_30], %158 {strides = array<i32>} : memref<1x128xf32, #tpu.memory_space<vmem>>, vector<1x128xf32>,
    return
  }
  func.func @transform_0(%arg0: i32) -> (i32, i32) {
    %c0_i32 = arith.constant 0 : i32
    %c0_i32_0 = arith.constant 0 : i32
    %c0_i32_1 = arith.constant 0 : i32
    return %c0_i32, %c0_i32_0 : i32, i32
  }
  func.func @transform_1(%arg0: i32) -> (i32, i32) {
    %c0_i32 = arith.constant 0 : i32
    %c0_i32_0 = arith.constant 0 : i32
    %c0_i32_1 = arith.constant 0 : i32
    return %c0_i32, %c0_i32_0 : i32, i32
  }
  func.func @transform_2(%arg0: i32) -> (i32, i32) {
    %c0_i32 = arith.constant 0 : i32
    %c0_i32_0 = arith.constant 0 : i32
    %c0_i32_1 = arith.constant 0 : i32
    return %c0_i32, %c0_i32_0 : i32, i32
  }
  func.func @transform_3(%arg0: i32) -> (i32, i32) {
    %c0_i32 = arith.constant 0 : i32
    %c0_i32_0 = arith.constant 0 : i32
    %c0_i32_1 = arith.constant 0 : i32
    return %c0_i32, %c0_i32_0 : i32, i32
  }
}

</mosaic_0001>

<llo_original>
// kernel: _forward_impl.1
$region0: #{_forward_impl.1}
  #allocation0 [shape = 'u32[]', space=smem, size = 0x4, offset = 0x4, fixed_abs, tag = 'smem constant byte address 0x4 - core index']
  #allocation1 [shape = 'u32[72,128]{1,0:T(1,128)}', space=vmem, size = 0x9000, scoped, tag = 'internal scratch']
  %s0 = inlined_call_operand.vmem [shape: f32[32,128], index: 0, kind: input, shape index: {}]
  %s1 = inlined_call_operand.vmem [shape: s32[32,2], index: 1, kind: input, shape index: {}]
  %s2 = inlined_call_operand.vmem [shape: f32[8,32], index: 2, kind: input, shape index: {}]
  %s3 = inlined_call_operand.vmem [shape: f32[1,128], index: 3, kind: output, shape index: {}]
  %s4 = sld [smem:[#allocation0]]
  $region22: #{_forward_impl.1} parent=0
    _
  %s6 = ssub.s32 1, %s4
  %s7 = scalar_select 0, %s6, %s4
  // Predicated region
  $region2: #{_forward_impl.1} parent=0 // pred_check
    _
  $region3: #{_forward_impl.1} parent=0 // pred_check_branch
    %9 = sbr.rel (0) target = $region5
  $region4: #{_forward_impl.1} parent=0 // pred_region
    _
  $region5: #{_forward_impl.1} parent=0 // pred_fallthru
    _
  // Predicated region
  $region6: #{_forward_impl.1} parent=0 // pred_check
    _
  $region7: #{_forward_impl.1} parent=0 // pred_check_branch
    %11 = sbr.rel (0) target = $region9
  $region8: #{_forward_impl.1} parent=0 // pred_region
    _
  $region9: #{_forward_impl.1} parent=0 // pred_fallthru
    _
  // Predicated region
  $region10: #{_forward_impl.1} parent=0 // pred_check
    _
  $region11: #{_forward_impl.1} parent=0 // pred_check_branch
    %13 = sbr.rel (0) target = $region13
  $region12: #{_forward_impl.1} parent=0 // pred_region
    _
  $region13: #{_forward_impl.1} parent=0 // pred_fallthru
    _
  %v14 = vld [vmem:[%s0] sm:$0xff]
  %v15 = vld [vmem:[%s0 + $0x8] sm:$0xff]
  %v16 = vld [vmem:[%s0 + $0x10] sm:$0xff]
  %v17 = vld [vmem:[%s0 + $0x18] sm:$0xff]
  %v18 = vld [vmem:[%s1] sm:$0xff]
  %v19 = vld [vmem:[%s1 + $0x8] sm:$0xff]
  %v20 = vld [vmem:[%s1 + $0x10] sm:$0xff]
  %v21 = vld [vmem:[%s1 + $0x18] sm:$0xff]
  %v22 = vlaneseq
  %v23 = vand.u32 %v22, 127
  %vm24 = vcmp.eq.s32.totalorder %v23, 0
  %v25 = vsel %vm24, %v18, 0
  %v26 = vsel %vm24, %v19, 0
  %v27 = vsel %vm24, %v20, 0
  %v28 = vsel %vm24, %v21, 0
  %vm29 = vcmask 15360
  %v30 = vsel %vm29, %v25, 0
  %v31 = vand.u32 %v30, 65535
  %v32 = vshrl.u32 %v30, 16
  %v33 = vcvt.s32.f32 %v31
  %v34 = vcvt.s32.f32 %v32
  %35 = vadd.xlane.f32.xlu0 %v33
  %v36 = vpop.xlane.xlu0 %35
  %37 = vadd.xlane.f32.xlu0 %v34
  %v38 = vpop.xlane.xlu0 %37
  %v39 = vcvt.f32.s32 %v36
  %v40 = vcvt.f32.s32 %v38
  %v41 = vshll.u32 %v40, 16
  %v42 = vadd.s32 %v41, %v39
  %v43 = vsel %vm29, %v26, 0
  %v44 = vand.u32 %v43, 65535
  %v45 = vshrl.u32 %v43, 16
  %v46 = vcvt.s32.f32 %v44
  %v47 = vcvt.s32.f32 %v45
  %48 = vadd.xlane.f32.xlu0 %v46
  %v49 = vpop.xlane.xlu0 %48
  %50 = vadd.xlane.f32.xlu0 %v47
  %v51 = vpop.xlane.xlu0 %50
  %v52 = vcvt.f32.s32 %v49
  %v53 = vcvt.f32.s32 %v51
  %v54 = vshll.u32 %v53, 16
  %v55 = vadd.s32 %v54, %v52
  %v56 = vsel %vm29, %v27, 0
  %v57 = vand.u32 %v56, 65535
  %v58 = vshrl.u32 %v56, 16
  %v59 = vcvt.s32.f32 %v57
  %v60 = vcvt.s32.f32 %v58
  %61 = vadd.xlane.f32.xlu0 %v59
  %v62 = vpop.xlane.xlu0 %61
  %63 = vadd.xlane.f32.xlu0 %v60
  %v64 = vpop.xlane.xlu0 %63
  %v65 = vcvt.f32.s32 %v62
  %v66 = vcvt.f32.s32 %v64
  %v67 = vshll.u32 %v66, 16
  %v68 = vadd.s32 %v67, %v65
  %v69 = vsel %vm29, %v28, 0
  %v70 = vand.u32 %v69, 65535
  %v71 = vshrl.u32 %v69, 16
  %v72 = vcvt.s32.f32 %v70
  %v73 = vcvt.s32.f32 %v71
  %74 = vadd.xlane.f32.xlu0 %v72
  %v75 = vpop.xlane.xlu0 %74
  %76 = vadd.xlane.f32.xlu0 %v73
  %v77 = vpop.xlane.xlu0 %76
  %v78 = vcvt.f32.s32 %v75
  %v79 = vcvt.f32.s32 %v77
  %v80 = vshll.u32 %v79, 16
  %v81 = vadd.s32 %v80, %v78
  %vm82 = vcmp.eq.s32.totalorder %v23, 1
  %v83 = vsel %vm82, %v18, 0
  %v84 = vsel %vm82, %v19, 0
  %v85 = vsel %vm82, %v20, 0
  %v86 = vsel %vm82, %v21, 0
  %v87 = vsel %vm29, %v83, 0
  %v88 = vand.u32 %v87, 65535
  %v89 = vshrl.u32 %v87, 16
  %v90 = vcvt.s32.f32 %v88
  %v91 = vcvt.s32.f32 %v89
  %92 = vadd.xlane.f32.xlu0 %v90
  %v93 = vpop.xlane.xlu0 %92
  %94 = vadd.xlane.f32.xlu0 %v91
  %v95 = vpop.xlane.xlu0 %94
  %v96 = vcvt.f32.s32 %v93
  %v97 = vcvt.f32.s32 %v95
  %v98 = vshll.u32 %v97, 16
  %v99 = vadd.s32 %v98, %v96
  %v100 = vsel %vm29, %v84, 0
  %v101 = vand.u32 %v100, 65535
  %v102 = vshrl.u32 %v100, 16
  %v103 = vcvt.s32.f32 %v101
  %v104 = vcvt.s32.f32 %v102
  %105 = vadd.xlane.f32.xlu0 %v103
  %v106 = vpop.xlane.xlu0 %105
  %107 = vadd.xlane.f32.xlu0 %v104
  %v108 = vpop.xlane.xlu0 %107
  %v109 = vcvt.f32.s32 %v106
  %v110 = vcvt.f32.s32 %v108
  %v111 = vshll.u32 %v110, 16
  %v112 = vadd.s32 %v111, %v109
  %v113 = vsel %vm29, %v85, 0
  %v114 = vand.u32 %v113, 65535
  %v115 = vshrl.u32 %v113, 16
  %v116 = vcvt.s32.f32 %v114
  %v117 = vcvt.s32.f32 %v115
  %118 = vadd.xlane.f32.xlu0 %v116
  %v119 = vpop.xlane.xlu0 %118
  %120 = vadd.xlane.f32.xlu0 %v117
  %v121 = vpop.xlane.xlu0 %120
  %v122 = vcvt.f32.s32 %v119
  %v123 = vcvt.f32.s32 %v121
  %v124 = vshll.u32 %v123, 16
  %v125 = vadd.s32 %v124, %v122
  %v126 = vsel %vm29, %v86, 0
  %v127 = vand.u32 %v126, 65535
  %v128 = vshrl.u32 %v126, 16
  %v129 = vcvt.s32.f32 %v127
  %v130 = vcvt.s32.f32 %v128
  %131 = vadd.xlane.f32.xlu0 %v129
  %v132 = vpop.xlane.xlu0 %131
  %133 = vadd.xlane.f32.xlu0 %v130
  %v134 = vpop.xlane.xlu0 %133
  %v135 = vcvt.f32.s32 %v132
  %v136 = vcvt.f32.s32 %v134
  %v137 = vshll.u32 %v136, 16
  %v138 = vadd.s32 %v137, %v135
  %v139 = vcvt.s32.f32 %v99
  %v140 = vcvt.s32.f32 %v112
  %v141 = vcvt.s32.f32 %v125
  %v142 = vcvt.s32.f32 %v138
  %vm143 = vcmp.ge.s32.totalorder %v42, 0
  %vm144 = vcmp.ge.s32.totalorder %v55, 0
  %vm145 = vcmp.ge.s32.totalorder %v68, 0
  %vm146 = vcmp.ge.s32.totalorder %v81, 0
  %v147 = vsel %vm143, 1, 0
  %v148 = vsel %vm144, 1, 0
  %v149 = vsel %vm145, 1, 0
  %v150 = vsel %vm146, 1, 0
  %v151 = vcvt.s32.f32 %v147
  %v152 = vcvt.s32.f32 %v148
  %v153 = vcvt.s32.f32 %v149
  %v154 = vcvt.s32.f32 %v150
  %vm155 = vcmp.eq.s32.totalorder %v23, %v42
  %vm156 = vcmp.eq.s32.totalorder %v23, %v55
  %vm157 = vcmp.eq.s32.totalorder %v23, %v68
  %vm158 = vcmp.eq.s32.totalorder %v23, %v81
  %v159 = vsel %vm155, 1, 0
  %v160 = vsel %vm156, 1, 0
  %v161 = vsel %vm157, 1, 0
  %v162 = vsel %vm158, 1, 0
  %v163 = vcvt.s32.f32 %v159
  %v164 = vcvt.s32.f32 %v160
  %v165 = vcvt.s32.f32 %v161
  %v166 = vcvt.s32.f32 %v162
  %vm167 = vcmp.lt.s32.totalorder %v23, %v99
  %vm168 = vcmp.lt.s32.totalorder %v23, %v112
  %vm169 = vcmp.lt.s32.totalorder %v23, %v125
  %vm170 = vcmp.lt.s32.totalorder %v23, %v138
  %v171 = vsel %vm167, 1, 0
  %v172 = vsel %vm168, 1, 0
  %v173 = vsel %vm169, 1, 0
  %v174 = vsel %vm170, 1, 0
  %v175 = vcvt.s32.f32 %v171
  %v176 = vcvt.s32.f32 %v172
  %v177 = vcvt.s32.f32 %v173
  %v178 = vcvt.s32.f32 %v174
  %179 = vmax.xlane.f32.xlu0 %v14
  %v180 = vpop.xlane.xlu0 %179
  %181 = vmax.xlane.f32.xlu0 %v15
  %v182 = vpop.xlane.xlu0 %181
  %183 = vmax.xlane.f32.xlu0 %v16
  %v184 = vpop.xlane.xlu0 %183
  %185 = vmax.xlane.f32.xlu0 %v17
  %v186 = vpop.xlane.xlu0 %185
  %v187 = vsub.f32 %v14, %v180
  %v188 = vsub.f32 %v15, %v182
  %v189 = vsub.f32 %v16, %v184
  %v190 = vsub.f32 %v17, %v186
  %v191 = vmul.f32 %v187, 1.442695
  %v192 = vpow.pop %v191
  %v193 = vmul.f32 %v188, 1.442695
  %v194 = vpow.pop %v193
  %v195 = vmul.f32 %v189, 1.442695
  %v196 = vpow.pop %v195
  %v197 = vmul.f32 %v190, 1.442695
  %v198 = vpow.pop %v197
  %199 = vadd.xlane.f32.xlu0 %v192
  %v200 = vpop.xlane.xlu0 %199
  %201 = vadd.xlane.f32.xlu0 %v194
  %v202 = vpop.xlane.xlu0 %201
  %203 = vadd.xlane.f32.xlu0 %v196
  %v204 = vpop.xlane.xlu0 %203
  %205 = vadd.xlane.f32.xlu0 %v198
  %v206 = vpop.xlane.xlu0 %205
  %v207 = vlog2.pop %v200
  %v208 = vmul.f32 %v207, 0.6931472
  %v209 = vlog2.pop %v202
  %v210 = vmul.f32 %v209, 0.6931472
  %v211 = vlog2.pop %v204
  %v212 = vmul.f32 %v211, 0.6931472
  %v213 = vlog2.pop %v206
  %v214 = vmul.f32 %v213, 0.6931472
  %v215 = vadd.f32 %v180, %v208
  %v216 = vadd.f32 %v182, %v210
  %v217 = vadd.f32 %v184, %v212
  %v218 = vadd.f32 %v186, %v214
  %v219 = vmul.f32 %v163, %v14
  %v220 = vmul.f32 %v164, %v15
  %v221 = vmul.f32 %v165, %v16
  %v222 = vmul.f32 %v166, %v17
  %223 = vadd.xlane.f32.xlu0 %v219
  %v224 = vpop.xlane.xlu0 %223
  %225 = vadd.xlane.f32.xlu0 %v220
  %v226 = vpop.xlane.xlu0 %225
  %227 = vadd.xlane.f32.xlu0 %v221
  %v228 = vpop.xlane.xlu0 %227
  %229 = vadd.xlane.f32.xlu0 %v222
  %v230 = vpop.xlane.xlu0 %229
  %v231 = vmul.f32 %v175, %v14
  %v232 = vmul.f32 %v176, %v15
  %v233 = vmul.f32 %v177, %v16
  %v234 = vmul.f32 %v178, %v17
  %235 = vadd.xlane.f32.xlu0 %v231
  %v236 = vpop.xlane.xlu0 %235
  %237 = vadd.xlane.f32.xlu0 %v232
  %v238 = vpop.xlane.xlu0 %237
  %239 = vadd.xlane.f32.xlu0 %v233
  %v240 = vpop.xlane.xlu0 %239
  %241 = vadd.xlane.f32.xlu0 %v234
  %v242 = vpop.xlane.xlu0 %241
  %v243 = vmul.f32 %v224, 0.9
  %v244 = vmul.f32 %v226, 0.9
  %v245 = vmul.f32 %v228, 0.9
  %v246 = vmul.f32 %v230, 0.9
  %v247 = vsub.f32 %v215, %v243
  %v248 = vsub.f32 %v216, %v244
  %v249 = vsub.f32 %v217, %v245
  %v250 = vsub.f32 %v218, %v246
  %v251 = vrcp.pop %v139
  %v252 = vmul.f32 %v139, %v251
  %v253 = vsub.f32 1.0, %v252
  %v254 = vmul.f32 %v251, %v253
  %v255 = vadd.f32 %v251, %v254
  %vm256 = vweird.f32 %v139
  %vm257 = vweird.f32 %v251
  %vm258 = vmor %vm256, %vm257
  %v259 = vsel %vm258, %v251, %v255
  %v260 = vand.u32 2147483647, %v139
  %vm261 = vcmp.eq.f32.partialorder %v260, 8.507059e+37
  %v262 = vand.u32 %v139, 2147483648
  %v263 = vor.u32 1.1754944e-38, %v262
  %v264 = vsel %vm261, %v263, %v259
  %v265 = vmul.f32 %v236, %v264
  %v266 = vrcp.pop %v140
  %v267 = vmul.f32 %v140, %v266
  %v268 = vsub.f32 1.0, %v267
  %v269 = vmul.f32 %v266, %v268
  %v270 = vadd.f32 %v266, %v269
  %vm271 = vweird.f32 %v140
  %vm272 = vweird.f32 %v266
  %vm273 = vmor %vm271, %vm272
  %v274 = vsel %vm273, %v266, %v270
  %v275 = vand.u32 2147483647, %v140
  %vm276 = vcmp.eq.f32.partialorder %v275, 8.507059e+37
  %v277 = vand.u32 %v140, 2147483648
  %v278 = vor.u32 1.1754944e-38, %v277
  %v279 = vsel %vm276, %v278, %v274
  %v280 = vmul.f32 %v238, %v279
  %v281 = vrcp.pop %v141
  %v282 = vmul.f32 %v141, %v281
  %v283 = vsub.f32 1.0, %v282
  %v284 = vmul.f32 %v281, %v283
  %v285 = vadd.f32 %v281, %v284
  %vm286 = vweird.f32 %v141
  %vm287 = vweird.f32 %v281
  %vm288 = vmor %vm286, %vm287
  %v289 = vsel %vm288, %v281, %v285
  %v290 = vand.u32 2147483647, %v141
  %vm291 = vcmp.eq.f32.partialorder %v290, 8.507059e+37
  %v292 = vand.u32 %v141, 2147483648
  %v293 = vor.u32 1.1754944e-38, %v292
  %v294 = vsel %vm291, %v293, %v289
  %v295 = vmul.f32 %v240, %v294
  %v296 = vrcp.pop %v142
  %v297 = vmul.f32 %v142, %v296
  %v298 = vsub.f32 1.0, %v297
  %v299 = vmul.f32 %v296, %v298
  %v300 = vadd.f32 %v296, %v299
  %vm301 = vweird.f32 %v142
  %vm302 = vweird.f32 %v296
  %vm303 = vmor %vm301, %vm302
  %v304 = vsel %vm303, %v296, %v300
  %v305 = vand.u32 2147483647, %v142
  %vm306 = vcmp.eq.f32.partialorder %v305, 8.507059e+37
  %v307 = vand.u32 %v142, 2147483648
  %v308 = vor.u32 1.1754944e-38, %v307
  %v309 = vsel %vm306, %v308, %v304
  %v310 = vmul.f32 %v242, %v309
  %v311 = vmul.f32 %v265, 0.1
  %v312 = vmul.f32 %v280, 0.1
  %v313 = vmul.f32 %v295, 0.1
  %v314 = vmul.f32 %v310, 0.1
  %v315 = vsub.f32 %v247, %v311
  %v316 = vsub.f32 %v248, %v312
  %v317 = vsub.f32 %v249, %v313
  %v318 = vsub.f32 %v250, %v314
  %v319 = vmul.f32 %v315, %v151
  %v320 = vmul.f32 %v316, %v152
  %v321 = vmul.f32 %v317, %v153
  %v322 = vmul.f32 %v318, %v154
  %v323 = vld [vmem:[%s2] sm:$0xff]
  %v324 = vmul.f32 %v323, %v323
  %vm325 = vcmask 261120
  %v326 = vsel %vm325, %v324, 0.0
  %327 = vadd.xlane.f32.xlu0 %v326
  %v328 = vpop.xlane.xlu0 %327
  %v329 = vrsqrt.pop %v328
  %v330 = vmul.f32 %v329, %v328
  %v331 = vmul.f32 %v330, %v329
  %v332 = vmul.f32 0.5, %v331
  %v333 = vsub.f32 1.5, %v332
  %v334 = vmul.f32 %v329, %v333
  %v335 = vmul.f32 %v328, %v334
  %vm336 = vcmp.eq.f32.partialorder %v328, inf
  %v337 = vsel %vm336, %v328, %v335
  %vm338 = vcmp.eq.f32.partialorder %v328, 0.0
  %v339 = vand.u32 %v328, 2147483648
  %v340 = vsel %vm338, %v339, %v337
  %vm341 = vcmask 7168
  %v342 = vsel %vm341, %v340, 0.0
  %343 = vadd.xlane.f32.xlu0 %v342
  %v344 = vpop.xlane.xlu0 %343
  %v345 = vrot.slane %v344, 4
  %v346 = vadd.f32 %v344, %v345
  %v347 = vrot.slane %v346, 2
  %v348 = vadd.f32 %v346, %v347
  %v349 = vrot.slane %v348, 1
  %v350 = vadd.f32 %v348, %v349
  %s351 = vtos %v350
  %v352 = vstv %s351
  %v353 = vmul.f32 %v352, 0.125
  %v354 = vsel %vm341, %v319, 0.0
  %355 = vadd.xlane.f32.xlu0 %v354
  %v356 = vpop.xlane.xlu0 %355
  %v357 = vrot.slane %v356, 4
  %v358 = vadd.f32 %v356, %v357
  %v359 = vrot.slane %v358, 2
  %v360 = vadd.f32 %v358, %v359
  %v361 = vrot.slane %v360, 1
  %v362 = vadd.f32 %v360, %v361
  %s363 = vtos %v362
  %v364 = vsel %vm341, %v151, 0.0
  %365 = vadd.xlane.f32.xlu0 %v364
  %v366 = vpop.xlane.xlu0 %365
  %v367 = vrot.slane %v366, 4
  %v368 = vadd.f32 %v366, %v367
  %v369 = vrot.slane %v368, 2
  %v370 = vadd.f32 %v368, %v369
  %v371 = vrot.slane %v370, 1
  %v372 = vadd.f32 %v370, %v371
  %s373 = vtos %v372
  %v374 = vstv %s363
  %v375 = vsel %vm24, %v374, 0.0
  %v376 = vstv %s373
  %v377 = vsel %vm82, %v376, %v375
  %v378 = vsel %vm341, %v320, 0.0
  %379 = vadd.xlane.f32.xlu0 %v378
  %v380 = vpop.xlane.xlu0 %379
  %v381 = vrot.slane %v380, 4
  %v382 = vadd.f32 %v380, %v381
  %v383 = vrot.slane %v382, 2
  %v384 = vadd.f32 %v382, %v383
  %v385 = vrot.slane %v384, 1
  %v386 = vadd.f32 %v384, %v385
  %s387 = vtos %v386
  %v388 = vsel %vm341, %v152, 0.0
  %389 = vadd.xlane.f32.xlu0 %v388
  %v390 = vpop.xlane.xlu0 %389
  %v391 = vrot.slane %v390, 4
  %v392 = vadd.f32 %v390, %v391
  %v393 = vrot.slane %v392, 2
  %v394 = vadd.f32 %v392, %v393
  %v395 = vrot.slane %v394, 1
  %v396 = vadd.f32 %v394, %v395
  %s397 = vtos %v396
  %vm398 = vcmp.eq.s32.totalorder %v23, 2
  %v399 = vstv %s387
  %v400 = vsel %vm398, %v399, %v377
  %vm401 = vcmp.eq.s32.totalorder %v23, 3
  %v402 = vstv %s397
  %v403 = vsel %vm401, %v402, %v400
  %v404 = vsel %vm341, %v321, 0.0
  %405 = vadd.xlane.f32.xlu0 %v404
  %v406 = vpop.xlane.xlu0 %405
  %v407 = vrot.slane %v406, 4
  %v408 = vadd.f32 %v406, %v407
  %v409 = vrot.slane %v408, 2
  %v410 = vadd.f32 %v408, %v409
  %v411 = vrot.slane %v410, 1
  %v412 = vadd.f32 %v410, %v411
  %s413 = vtos %v412
  %v414 = vsel %vm341, %v153, 0.0
  %415 = vadd.xlane.f32.xlu0 %v414
  %v416 = vpop.xlane.xlu0 %415
  %v417 = vrot.slane %v416, 4
  %v418 = vadd.f32 %v416, %v417
  %v419 = vrot.slane %v418, 2
  %v420 = vadd.f32 %v418, %v419
  %v421 = vrot.slane %v420, 1
  %v422 = vadd.f32 %v420, %v421
  %s423 = vtos %v422
  %vm424 = vcmp.eq.s32.totalorder %v23, 4
  %v425 = vstv %s413
  %v426 = vsel %vm424, %v425, %v403
  %vm427 = vcmp.eq.s32.totalorder %v23, 5
  %v428 = vstv %s423
  %v429 = vsel %vm427, %v428, %v426
  %v430 = vsel %vm341, %v322, 0.0
  %431 = vadd.xlane.f32.xlu0 %v430
  %v432 = vpop.xlane.xlu0 %431
  %v433 = vrot.slane %v432, 4
  %v434 = vadd.f32 %v432, %v433
  %v435 = vrot.slane %v434, 2
  %v436 = vadd.f32 %v434, %v435
  %v437 = vrot.slane %v436, 1
  %v438 = vadd.f32 %v436, %v437
  %s439 = vtos %v438
  %v440 = vsel %vm341, %v154, 0.0
  %441 = vadd.xlane.f32.xlu0 %v440
  %v442 = vpop.xlane.xlu0 %441
  %v443 = vrot.slane %v442, 4
  %v444 = vadd.f32 %v442, %v443
  %v445 = vrot.slane %v444, 2
  %v446 = vadd.f32 %v444, %v445
  %v447 = vrot.slane %v446, 1
  %v448 = vadd.f32 %v446, %v447
  %s449 = vtos %v448
  %vm450 = vcmp.eq.s32.totalorder %v23, 6
  %v451 = vstv %s439
  %v452 = vsel %vm450, %v451, %v429
  %vm453 = vcmp.eq.s32.totalorder %v23, 7
  %v454 = vstv %s449
  %v455 = vsel %vm453, %v454, %v452
  %vm456 = vcmp.eq.s32.totalorder %v23, 8
  %v457 = vsel %vm456, %v353, %v455
  %458 = vst [vmem:[%s3] sm:$0x1] %v457
  // Predicated region
  $region14: #{_forward_impl.1} parent=0 // pred_check
    _
  $region15: #{_forward_impl.1} parent=0 // pred_check_branch
    %460 = sbr.rel (0) target = $region17
  $region16: #{_forward_impl.1} parent=0 // pred_region
    _
  $region17: #{_forward_impl.1} parent=0 // pred_fallthru
    _
  // Predicated region
  $region18: #{_forward_impl.1} parent=0 // pred_check
    _
  $region19: #{_forward_impl.1} parent=0 // pred_check_branch
    %462 = sbr.rel (0) target = $region21
  $region20: #{_forward_impl.1} parent=0 // pred_region
    _
  $region21: #{_forward_impl.1} parent=0 // pred_fallthru
    _

</llo_original>
